<compile_context>
chip_gen: v7x
topology: tpu7x:2x2x1
jax: 0.10.0
libtpu: 0.0.40
codegen_flags: <defaults>
</compile_context>

<pallas_src>
import numpy as np
import jax
import jax.numpy as jnp
from jax.experimental import pallas as pl
from jax.experimental.pallas import tpu as pltpu

# ------------------------------- configuration -------------------------------
B = 2
IN_CH = 16                 # in_channel
CC = 4                     # channel_chunck
RED = 2                    # channel_reduction
NL = IN_CH // CC           # chunks per batch element ("nlayers")
CCR = CC // RED            # SE hidden width
H = W = 16
HW = H * W
HO = (H + 2 * 1 - 3) // 2 + 1      # conv 3x3, stride 2, pad 1
WO = (W + 2 * 1 - 3) // 2 + 1
HOWO = HO * WO
HOWO_PAD = 128             # lane-dense padding of the downsampled spatial dim
EPS = 1e-5

# batch-folded sizes
BC = B * IN_CH             # folded channel axis (32)
BNL = B * NL               # folded chunk count  (8)
BSEH = BNL * CCR           # folded SE hidden    (16)


def _sigmoid(v):
    # tanh form: transcendental lands on the EUP slot, no full-precision divide.
    return 0.5 * (jnp.tanh(0.5 * v) + 1.0)


# -------------------------------- Pallas kernel -------------------------------
def lga_kernel(x_ref, sew_ref, rowb_ref, dec8_ref, dec2_ref, G_ref, E_ref,
               m1t_ref, ut_ref, scal_ref, o_ref):
    f32 = jnp.float32
    bf16 = jnp.bfloat16
    x = x_ref[...]                                               # (BC, HW) f32

    # ---- unpack small packed weights (value-level static slices, single vreg)
    sew = sew_ref[...]                                           # (BC, 2*BSEH+B+1)
    w1t = sew[:, 0:BSEH]                                         # (BC, BSEH)
    w2 = sew[:, BSEH:2 * BSEH]                                   # (BC, BSEH)
    Qt = sew[:, 2 * BSEH:2 * BSEH + B]                           # (BC, B)
    b2 = sew[:, 2 * BSEH + B:2 * BSEH + B + 1]                   # (BC, 1)
    rowb = rowb_ref[...]                                         # (1, BSEH+B)
    b1 = rowb[:, 0:BSEH]                                         # (1, BSEH)
    g1b = rowb[:, BSEH:BSEH + B]                                 # (1, B)
    dec8 = dec8_ref[...]                                         # (BNL, 2*B+2)
    g2w = dec8[:, 0:B]
    g2b = dec8[:, B:B + 1]
    dBw = dec8[:, B + 1:2 * B + 1]
    dBb = dec8[:, 2 * B + 1:2 * B + 2]
    dec2 = dec2_ref[...]                                         # (B, BNL+1)
    dAw = dec2[:, 0:BNL]
    dAb = dec2[:, BNL:BNL + 1]

    # ---- per-chunk squeeze-excite: VPU multiplies + XLU reduces only
    #      (no N=1 MXU dispatches on the critical path).
    pooled = jnp.mean(x, axis=1, keepdims=True)                  # (BC, 1)  lane reduce
    h1 = jnp.maximum(jnp.sum(w1t * pooled, axis=0, keepdims=True) + b1, 0.0)   # (1, BSEH)
    se = _sigmoid(jnp.sum(w2 * h1, axis=1, keepdims=True) + b2)  # (BC, 1)
    x_se = x * se                                                # (BC, HW)  full VPU pass 1

    # ---- global (scale) attention, decoupled from sd:
    #      mean(x*se, HW) == se*pooled, and Q = g1w_blk @ G is pre-folded in glue,
    #      so z1/z2 overlap with the big matmuls below.
    sp = se * pooled                                             # (BC, 1)
    z1 = jnp.maximum(jnp.sum(Qt * sp, axis=0, keepdims=True) + g1b, 0.0)        # (1, B)
    z2 = jnp.sum(g2w * z1, axis=1, keepdims=True) + g2b          # (BNL, 1)

    # ---- spatial attention branch
    # conv1(3x3,s2,p1)+BN as a dense matmul (lane-padded to 128), issued on sd
    # directly (z2 row-scale commutes with the matmul); bilinear upsample with
    # conv2+BN scale folded in; conv2 bias + relu.
    sd = jnp.dot(G_ref[...], x_se, preferred_element_type=f32)   # (BNL, HW) chunk means
    t = jnp.dot(sd.astype(bf16), m1t_ref[...], preferred_element_type=f32)      # (BNL, HOWO_PAD)
    y1 = jnp.maximum(z2 * t + scal_ref[0], 0.0)                  # (BNL, HOWO_PAD)
    up = jnp.dot(y1.astype(bf16), ut_ref[...], preferred_element_type=f32)      # (BNL, HW)
    y2 = jnp.maximum(up + scal_ref[1], 0.0)
    # global_spatial_decoder: ConvBlock(NL,1,1) -> ConvBlock(1,NL,1) -> sigmoid
    d1 = jnp.maximum(jnp.dot(dAw, y2, preferred_element_type=f32) + dAb, 0.0)   # (B, HW)
    d2 = jnp.maximum(jnp.dot(dBw, d1, preferred_element_type=f32) + dBb, 0.0)   # (BNL, HW)
    spw = _sigmoid(d2)                                           # (BNL, HW)

    # ---- fused output:  x_se*(E@z2)*(E@spw) == x_se*(E@(z2*spw))
    o_ref[...] = x_se * jnp.dot(E_ref[...], z2 * spw,
                                preferred_element_type=f32)      # full VPU pass 2


# ------------------------------ wrapper / call --------------------------------
def local_global_attention_hybrid(x_nchw, ops):
    b, c, h, w = x_nchw.shape
    x_flat = x_nchw.reshape(b * c, h * w).astype(jnp.float32)
    n_ops = len(ops)                               # packed operands (scal last)
    in_specs = (
        [pl.BlockSpec(memory_space=pltpu.MemorySpace.VMEM)] * n_ops   # x + dense operands
        + [pl.BlockSpec(memory_space=pltpu.MemorySpace.SMEM)]          # the two scalars
    )
    bc, bnl, hw = b * c, b * (c // CC), h * w
    flops = 2 * (bnl * bc * hw            # sd = G @ x_se
                 + bnl * hw * HOWO_PAD    # t  = sd @ m1t
                 + bnl * HOWO_PAD * hw    # up = y1 @ ut
                 + b * bnl * hw           # d1
                 + bnl * b * hw           # d2
                 + bc * bnl * hw)         # E @ (z2*spw)
    flops += 8 * bc * hw                  # elementwise passes (approx)
    transcendentals = bc + bnl * hw       # two sigmoids (tanh)
    bytes_accessed = int(2 * x_flat.size * x_flat.dtype.itemsize
                         + sum(int(np.prod(o.shape)) * o.dtype.itemsize for o in ops))
    out = pl.pallas_call(
        lga_kernel,
        out_shape=jax.ShapeDtypeStruct((b * c, h * w), jnp.float32),
        in_specs=in_specs,
        out_specs=pl.BlockSpec(memory_space=pltpu.MemorySpace.VMEM),
        input_output_aliases={0: 0},      # x_flat and out share shape/dtype
        cost_estimate=pl.CostEstimate(flops=int(flops),
                                      transcendentals=int(transcendentals),
                                      bytes_accessed=bytes_accessed),
    )(x_flat, *ops)
    return out.reshape(b, c, h, w)


# ------------------------------ parameter glue --------------------------------
def bn_fold(gamma, beta, mean, var, eps=EPS):
    gamma, beta, mean, var = (np.asarray(v, np.float64) for v in (gamma, beta, mean, var))
    s = gamma / np.sqrt(var + eps)
    return s, beta - mean * s


def conv3x3_s2_matrix(w3, h, w, ho, wo):
    """Dense (ho*wo, h*w) matrix realising conv2d(k=3, s=2, p=1)."""
    M = np.zeros((ho * wo, h * w), np.float64)
    for oy in range(ho):
        for ox in range(wo):
            for ky in range(3):
                for kx in range(3):
                    iy = 2 * oy - 1 + ky
                    ix = 2 * ox - 1 + kx
                    if 0 <= iy < h and 0 <= ix < w:
                        M[oy * wo + ox, iy * w + ix] += float(w3[ky, kx])
    return M


def bilinear_matrix(out_size, in_size):
    """1-D bilinear upsample weights, align_corners=False."""
    R = np.zeros((out_size, in_size), np.float64)
    scale = in_size / out_size
    for i in range(out_size):
        src = max((i + 0.5) * scale - 0.5, 0.0)
        i0 = min(int(np.floor(src)), in_size - 1)
        i1 = min(i0 + 1, in_size - 1)
        lam = src - i0
        R[i, i0] += 1.0 - lam
        R[i, i1] += lam
    return R


def build_params(key):
    ks = jax.random.split(key, 16)
    r = lambda k, shape, s=0.5: np.asarray(s * jax.random.normal(k, shape, jnp.float32),
                                           np.float64)
    p = {}
    # SELayer (shared across chunks): FC(CC,CCR) -> ReLU -> FC(CCR,CC) -> Sigmoid
    p["se1_w"] = r(ks[0], (CCR, CC)); p["se1_b"] = r(ks[1], (CCR,), 0.1)
    p["se2_w"] = r(ks[2], (CC, CCR)); p["se2_b"] = r(ks[3], (CC,), 0.1)
    # global_attention_fc: Linear(NL,1) -> ReLU -> Linear(1,NL)
    p["g1_w"] = r(ks[4], (1, NL)); p["g1_b"] = r(ks[5], (1,), 0.1)
    p["g2_w"] = r(ks[6], (NL, 1)); p["g2_b"] = r(ks[7], (NL,), 0.1)
    # conv1s: shared ConvBlock(1,1,3,s=2,p=1); BN running stats (eval mode)
    p["c1_w"] = r(ks[8], (3, 3)); p["c1_b"] = float(r(ks[9], (), 0.1))
    p["bn1"] = (1.1, 0.05, 0.02, 0.9)
    # conv2s: shared ConvBlock(1,1,1)
    p["c2_w"] = float(r(ks[10], (), 1.0)); p["c2_b"] = float(r(ks[11], (), 0.1))
    p["bn2"] = (0.9, -0.03, 0.01, 1.1)
    # global_spatial_decoder: ConvBlock(NL,1,1) -> ConvBlock(1,NL,1)
    p["dA_w"] = r(ks[12], (1, NL)); p["dA_b"] = float(r(ks[13], (), 0.1))
    p["bnA"] = (1.05, 0.02, -0.01, 1.0)
    p["dB_w"] = r(ks[14], (NL, 1)); p["dB_b"] = r(ks[15], (NL,), 0.1)
    p["bnB"] = (1.0 + 0.05 * np.arange(NL, dtype=np.float64),
                0.01 * np.arange(NL, dtype=np.float64),
                0.02 * np.arange(NL, dtype=np.float64),
                1.0 + 0.1 * np.arange(NL, dtype=np.float64))
    return p


def pack_operands(p):
    eyeB, eyeBNL = np.eye(B), np.eye(BNL)

    # SE weights (shared), block-diag across all B*NL chunks, oriented for the
    # VPU broadcast-multiply + reduce formulation used in the kernel.
    w1 = np.kron(eyeBNL, p["se1_w"])                          # (BSEH, BC)
    w2 = np.kron(eyeBNL, p["se2_w"])                          # (BC, BSEH)
    b1_row = np.tile(p["se1_b"], BNL)                         # (BSEH,)
    b2_col = np.tile(p["se2_b"], BNL)                         # (BC,)

    # chunk-mean (G) and chunk-broadcast (E) matrices
    G = np.kron(eyeBNL, np.full((1, CC), 1.0 / CC))           # (BNL, BC)
    E = np.kron(eyeBNL, np.ones((CC, 1)))                     # (BC, BNL)

    # global_attention_fc; the chunk-mean is pre-folded: Q = g1w_blk @ G.
    g1w_blk = np.kron(eyeB, p["g1_w"])                        # (B, BNL)
    Q = g1w_blk @ G                                           # (B, BC)
    g1b_row = np.tile(p["g1_b"], B)                           # (B,)
    g2w_blk = np.kron(eyeB, p["g2_w"])                        # (BNL, B)
    g2b_col = np.tile(p["g2_b"], B)                           # (BNL,)

    # spatial decoder (BN folded), block-diag per batch
    sA, tA = bn_fold(*p["bnA"])
    dAw = np.kron(eyeB, sA * p["dA_w"]); dAb = np.full(B, float(sA * p["dA_b"] + tA))
    sB_, tB_ = bn_fold(*p["bnB"])
    dBw = np.kron(eyeB, sB_[:, None] * p["dB_w"]); dBb = np.tile(sB_ * p["dB_b"] + tB_, B)

    # packed small operands (lane concatenation; static slices in-kernel)
    sew = np.concatenate([w1.T, w2, Q.T, b2_col[:, None]], axis=1)      # (BC, 2*BSEH+B+1)
    rowb = np.concatenate([b1_row, g1b_row])[None, :]                   # (1, BSEH+B)
    dec8 = np.concatenate([g2w_blk, g2b_col[:, None],
                           dBw, dBb[:, None]], axis=1)                  # (BNL, 2*B+2)
    dec2 = np.concatenate([dAw, dAb[:, None]], axis=1)                  # (B, BNL+1)

    # conv1 (3x3,s2,p1)+BN folded, lane-padded 64 -> 128 (bf16 for DMA)
    s1, t1 = bn_fold(*p["bn1"])
    M1 = conv3x3_s2_matrix(p["c1_w"], H, W, HO, WO)           # (HOWO, HW)
    m1t = np.zeros((HW, HOWO_PAD))
    m1t[:, :HOWO] = (s1 * M1).T
    c1b_eff = float(s1 * p["c1_b"] + t1)

    # bilinear upsample with conv2+BN scale folded in (bf16 for DMA)
    s2, t2 = bn_fold(*p["bn2"])
    U = np.kron(bilinear_matrix(H, HO), bilinear_matrix(W, WO))    # (HW, HOWO)
    ut = np.zeros((HOWO_PAD, HW))
    ut[:HOWO, :] = (s2 * p["c2_w"]) * U.T
    c2b_eff = float(s2 * p["c2_b"] + t2)

    # The padded lanes [HOWO:HOWO_PAD] of y1 hold relu(c1b_eff) garbage; they are
    # cancelled only because the matching rows of ut are exactly zero.  Guard it.
    assert np.all(ut[HOWO:, :] == 0.0), "padded upsample rows must stay exactly zero"
    assert np.all(m1t[:, HOWO:] == 0.0), "padded conv1 columns must stay exactly zero"

    scal = np.array([c1b_eff, c2b_eff])                       # -> SMEM

    f32 = lambda a: jnp.asarray(a, jnp.float32)
    b16 = lambda a: jnp.asarray(a, jnp.bfloat16)
    return (f32(sew), f32(rowb), f32(dec8), f32(dec2), f32(G), f32(E),
            b16(m1t), b16(ut), f32(scal))


# ------------------- independent float64 reference (NumPy) --------------------
def reference_np(x, p):
    """Direct per-batch / per-chunk translation of the PyTorch forward."""
    M1 = conv3x3_s2_matrix(p["c1_w"], H, W, HO, WO)
    U = np.kron(bilinear_matrix(H, HO), bilinear_matrix(W, WO))
    bnBg, bnBb, bnBm, bnBv = p["bnB"]
    sig = lambda v: 1.0 / (1.0 + np.exp(-v))
    bn = lambda y, g, b_, m, v: (y - m) / np.sqrt(v + EPS) * g + b_

    out = np.zeros((B, IN_CH, HW))
    for bi in range(B):
        xb = np.asarray(x[bi], np.float64).reshape(IN_CH, HW)
        layers = [xb[i * CC:(i + 1) * CC].copy() for i in range(NL)]
        # SELayer (shared weights)
        for i in range(NL):
            pooled = layers[i].mean(axis=1)
            h1 = np.maximum(p["se1_w"] @ pooled + p["se1_b"], 0.0)
            s = sig(p["se2_w"] @ h1 + p["se2_b"])
            layers[i] = layers[i] * s[:, None]
        # global (scale) attention
        sd = np.stack([l.mean(axis=0) for l in layers])           # (NL, HW)
        sw = sd.mean(axis=1)                                      # (NL,)
        z1 = np.maximum(p["g1_w"] @ sw + p["g1_b"], 0.0)          # (1,)
        z2 = (p["g2_w"] @ z1) + p["g2_b"]                         # (NL,)
        layers = [layers[i] * z2[i] for i in range(NL)]
        # spatial attention branch
        avgs = []
        for i in range(NL):
            a = layers[i].mean(axis=0)                            # (HW,)
            a = np.maximum(bn(M1 @ a + p["c1_b"], *p["bn1"]), 0.0)
            a = U @ a
            a = np.maximum(bn(p["c2_w"] * a + p["c2_b"], *p["bn2"]), 0.0)
            avgs.append(a)
        spd = np.stack(avgs)                                      # (NL, HW)
        d1 = np.maximum(bn(p["dA_w"] @ spd + p["dA_b"], *p["bnA"]), 0.0)
        d2 = np.maximum(bn(p["dB_w"] @ d1 + p["dB_b"][:, None],
                           bnBg[:, None], bnBb[:, None], bnBm[:, None], bnBv[:, None]), 0.0)
        spw = sig(d2)                                             # (NL, HW)
        layers = [layers[i] * spw[i][None, :] for i in range(NL)]
        out[bi] = np.concatenate(layers, axis=0)
    return out.reshape(B, IN_CH, H, W)


# ------------------------------------ main ------------------------------------
if __name__ == "__main__":
    key = jax.random.PRNGKey(0)
    kx, kp = jax.random.split(key)
    x = jax.random.normal(kx, (B, IN_CH, H, W), jnp.float32)
    x_np = np.asarray(x)          # snapshot before the (input/output-aliased) call

    params = build_params(kp)
    ops = pack_operands(params)

    out = local_global_attention_hybrid(x, ops)
    out = jax.block_until_ready(out)
    assert out.shape == (B, IN_CH, H, W)

    ref = reference_np(x_np, params)
    # Default single-pass MXU precision + bf16-stored constant matrices vs f64 ref.
    np.testing.assert_allclose(np.asarray(out, np.float64), ref, rtol=2e-2, atol=1e-2)
    print("KERNEL_OK")
</pallas_src>

<mosaic_0001>
module attributes {stable_mosaic.version = 11 : i64} {
  func.func @lga_kernel(%arg0: memref<32x256xf32, #tpu.memory_space<vmem>>, %arg1: memref<32x35xf32, #tpu.memory_space<vmem>>, %arg2: memref<1x18xf32, #tpu.memory_space<vmem>>, %arg3: memref<8x6xf32, #tpu.memory_space<vmem>>, %arg4: memref<2x9xf32, #tpu.memory_space<vmem>>, %arg5: memref<8x32xf32, #tpu.memory_space<vmem>>, %arg6: memref<32x8xf32, #tpu.memory_space<vmem>>, %arg7: memref<256x128xbf16, #tpu.memory_space<vmem>>, %arg8: memref<128x256xbf16, #tpu.memory_space<vmem>>, %arg9: memref<2xf32, #tpu.memory_space<smem>>, %arg10: memref<32x256xf32, #tpu.memory_space<vmem>>) attributes {dimension_semantics = [], scalar_prefetch = 0 : i64, scratch_operands = 0 : i64, tpu.core_type = #tpu.core_type<tc>} {
    %c0 = arith.constant 0 : index
    %c0_0 = arith.constant 0 : index
    %0 = vector.load %arg0[%c0, %c0_0] : memref<32x256xf32, #tpu.memory_space<vmem>>, vector<32x256xf32>
    %c0_1 = arith.constant 0 : index
    %c0_2 = arith.constant 0 : index
    %1 = vector.load %arg1[%c0_1, %c0_2] : memref<32x35xf32, #tpu.memory_space<vmem>>, vector<32x35xf32>
    %2 = vector.extract_strided_slice %1 {offsets = [0, 0], sizes = [32, 16], strides = [1, 1]} : vector<32x35xf32> to vector<32x16xf32>
    %3 = vector.extract_strided_slice %1 {offsets = [0, 16], sizes = [32, 16], strides = [1, 1]} : vector<32x35xf32> to vector<32x16xf32>
    %4 = vector.extract_strided_slice %1 {offsets = [0, 32], sizes = [32, 2], strides = [1, 1]} : vector<32x35xf32> to vector<32x2xf32>
    %5 = vector.extract_strided_slice %1 {offsets = [0, 34], sizes = [32, 1], strides = [1, 1]} : vector<32x35xf32> to vector<32x1xf32>
    %c0_3 = arith.constant 0 : index
    %c0_4 = arith.constant 0 : index
    %6 = vector.load %arg2[%c0_3, %c0_4] : memref<1x18xf32, #tpu.memory_space<vmem>>, vector<1x18xf32>
    %7 = vector.extract_strided_slice %6 {offsets = [0, 0], sizes = [1, 16], strides = [1, 1]} : vector<1x18xf32> to vector<1x16xf32>
    %8 = vector.extract_strided_slice %6 {offsets = [0, 16], sizes = [1, 2], strides = [1, 1]} : vector<1x18xf32> to vector<1x2xf32>
    %c0_5 = arith.constant 0 : index
    %c0_6 = arith.constant 0 : index
    %9 = vector.load %arg3[%c0_5, %c0_6] : memref<8x6xf32, #tpu.memory_space<vmem>>, vector<8x6xf32>
    %10 = vector.extract_strided_slice %9 {offsets = [0, 0], sizes = [8, 2], strides = [1, 1]} : vector<8x6xf32> to vector<8x2xf32>
    %11 = vector.extract_strided_slice %9 {offsets = [0, 2], sizes = [8, 1], strides = [1, 1]} : vector<8x6xf32> to vector<8x1xf32>
    %12 = vector.extract_strided_slice %9 {offsets = [0, 3], sizes = [8, 2], strides = [1, 1]} : vector<8x6xf32> to vector<8x2xf32>
    %13 = vector.extract_strided_slice %9 {offsets = [0, 5], sizes = [8, 1], strides = [1, 1]} : vector<8x6xf32> to vector<8x1xf32>
    %c0_7 = arith.constant 0 : index
    %c0_8 = arith.constant 0 : index
    %14 = vector.load %arg4[%c0_7, %c0_8] : memref<2x9xf32, #tpu.memory_space<vmem>>, vector<2x9xf32>
    %15 = vector.extract_strided_slice %14 {offsets = [0, 0], sizes = [2, 8], strides = [1, 1]} : vector<2x9xf32> to vector<2x8xf32>
    %16 = vector.extract_strided_slice %14 {offsets = [0, 8], sizes = [2, 1], strides = [1, 1]} : vector<2x9xf32> to vector<2x1xf32>
    %cst = arith.constant dense<0.000000e+00> : vector<32xf32>
    %17 = vector.multi_reduction <add>, %0, %cst [1] : vector<32x256xf32> to vector<32xf32>
    %18 = vector.shape_cast %17 : vector<32xf32> to vector<32x1xf32>
    %cst_9 = arith.constant 2.560000e+02 : f32
    %19 = vector.broadcast %cst_9 : f32 to vector<32x1xf32>
    %20 = arith.divf %18, %19 : vector<32x1xf32>
    %21 = vector.broadcast %20 : vector<32x1xf32> to vector<32x16xf32>
    %22 = arith.mulf %2, %21 : vector<32x16xf32>
    %cst_10 = arith.constant dense<0.000000e+00> : vector<16xf32>
    %23 = vector.multi_reduction <add>, %22, %cst_10 [0] : vector<32x16xf32> to vector<16xf32>
    %24 = vector.shape_cast %23 : vector<16xf32> to vector<1x16xf32>
    %25 = arith.addf %24, %7 : vector<1x16xf32>
    %cst_11 = arith.constant 0.000000e+00 : f32
    %26 = vector.broadcast %cst_11 : f32 to vector<1x16xf32>
    %27 = arith.maximumf %25, %26 : vector<1x16xf32>
    %28 = vector.broadcast %27 : vector<1x16xf32> to vector<32x16xf32>
    %29 = arith.mulf %3, %28 : vector<32x16xf32>
    %cst_12 = arith.constant dense<0.000000e+00> : vector<32xf32>
    %30 = vector.multi_reduction <add>, %29, %cst_12 [1] : vector<32x16xf32> to vector<32xf32>
    %31 = vector.shape_cast %30 : vector<32xf32> to vector<32x1xf32>
    %32 = arith.addf %31, %5 : vector<32x1xf32>
    %cst_13 = arith.constant 5.000000e-01 : f32
    %33 = vector.broadcast %cst_13 : f32 to vector<32x1xf32>
    %34 = arith.mulf %33, %32 : vector<32x1xf32>
    %35 = math.tanh %34 : vector<32x1xf32>
    %cst_14 = arith.constant 1.000000e+00 : f32
    %36 = vector.broadcast %cst_14 : f32 to vector<32x1xf32>
    %37 = arith.addf %35, %36 : vector<32x1xf32>
    %cst_15 = arith.constant 5.000000e-01 : f32
    %38 = vector.broadcast %cst_15 : f32 to vector<32x1xf32>
    %39 = arith.mulf %38, %37 : vector<32x1xf32>
    %40 = vector.broadcast %39 : vector<32x1xf32> to vector<32x256xf32>
    %41 = arith.mulf %0, %40 : vector<32x256xf32>
    %42 = arith.mulf %39, %20 : vector<32x1xf32>
    %43 = vector.broadcast %42 : vector<32x1xf32> to vector<32x2xf32>
    %44 = arith.mulf %4, %43 : vector<32x2xf32>
    %cst_16 = arith.constant dense<0.000000e+00> : vector<2xf32>
    %45 = vector.multi_reduction <add>, %44, %cst_16 [0] : vector<32x2xf32> to vector<2xf32>
    %46 = vector.shape_cast %45 : vector<2xf32> to vector<1x2xf32>
    %47 = arith.addf %46, %8 : vector<1x2xf32>
    %cst_17 = arith.constant 0.000000e+00 : f32
    %48 = vector.broadcast %cst_17 : f32 to vector<1x2xf32>
    %49 = arith.maximumf %47, %48 : vector<1x2xf32>
    %50 = vector.broadcast %49 : vector<1x2xf32> to vector<8x2xf32>
    %51 = arith.mulf %10, %50 : vector<8x2xf32>
    %cst_18 = arith.constant dense<0.000000e+00> : vector<8xf32>
    %52 = vector.multi_reduction <add>, %51, %cst_18 [1] : vector<8x2xf32> to vector<8xf32>
    %53 = vector.shape_cast %52 : vector<8xf32> to vector<8x1xf32>
    %54 = arith.addf %53, %11 : vector<8x1xf32>
    %c0_19 = arith.constant 0 : index
    %c0_20 = arith.constant 0 : index
    %55 = vector.load %arg5[%c0_19, %c0_20] : memref<8x32xf32, #tpu.memory_space<vmem>>, vector<8x32xf32>
    %cst_21 = arith.constant dense<0.000000e+00> : vector<8x256xf32>
    %56 = tpu.matmul %55, %41, %cst_21 {dimension_numbers = #tpu.dot_dimension_numbers<[1], [0], [0], [1], [0, 0, 1, 1], [], []>} : vector<8x32xf32>, vector<32x256xf32>, vector<8x256xf32> -> vector<8x256xf32>
    %57 = arith.truncf %56 : vector<8x256xf32> to vector<8x256xbf16>
    %c0_22 = arith.constant 0 : index
    %c0_23 = arith.constant 0 : index
    %58 = vector.load %arg7[%c0_22, %c0_23] : memref<256x128xbf16, #tpu.memory_space<vmem>>, vector<256x128xbf16>
    %cst_24 = arith.constant dense<0.000000e+00> : vector<8x128xf32>
    %59 = tpu.matmul %57, %58, %cst_24 {dimension_numbers = #tpu.dot_dimension_numbers<[1], [0], [0], [1], [0, 0, 1, 1], [], []>} : vector<8x256xbf16>, vector<256x128xbf16>, vector<8x128xf32> -> vector<8x128xf32>
    %60 = vector.broadcast %54 : vector<8x1xf32> to vector<8x128xf32>
    %61 = arith.mulf %60, %59 : vector<8x128xf32>
    %c0_25 = arith.constant 0 : index
    %62 = memref.load %arg9[%c0_25] : memref<2xf32, #tpu.memory_space<smem>>
    %63 = vector.broadcast %62 : f32 to vector<8x128xf32>
    %64 = arith.addf %61, %63 : vector<8x128xf32>
    %cst_26 = arith.constant 0.000000e+00 : f32
    %65 = vector.broadcast %cst_26 : f32 to vector<8x128xf32>
    %66 = arith.maximumf %64, %65 : vector<8x128xf32>
    %67 = arith.truncf %66 : vector<8x128xf32> to vector<8x128xbf16>
    %c0_27 = arith.constant 0 : index
    %c0_28 = arith.constant 0 : index
    %68 = vector.load %arg8[%c0_27, %c0_28] : memref<128x256xbf16, #tpu.memory_space<vmem>>, vector<128x256xbf16>
    %cst_29 = arith.constant dense<0.000000e+00> : vector<8x256xf32>
    %69 = tpu.matmul %67, %68, %cst_29 {dimension_numbers = #tpu.dot_dimension_numbers<[1], [0], [0], [1], [0, 0, 1, 1], [], []>} : vector<8x128xbf16>, vector<128x256xbf16>, vector<8x256xf32> -> vector<8x256xf32>
    %c1 = arith.constant 1 : index
    %70 = memref.load %arg9[%c1] : memref<2xf32, #tpu.memory_space<smem>>
    %71 = vector.broadcast %70 : f32 to vector<8x256xf32>
    %72 = arith.addf %69, %71 : vector<8x256xf32>
    %cst_30 = arith.constant 0.000000e+00 : f32
    %73 = vector.broadcast %cst_30 : f32 to vector<8x256xf32>
    %74 = arith.maximumf %72, %73 : vector<8x256xf32>
    %cst_31 = arith.constant dense<0.000000e+00> : vector<2x256xf32>
    %75 = tpu.matmul %15, %74, %cst_31 {dimension_numbers = #tpu.dot_dimension_numbers<[1], [0], [0], [1], [0, 0, 1, 1], [], []>} : vector<2x8xf32>, vector<8x256xf32>, vector<2x256xf32> -> vector<2x256xf32>
    %76 = vector.broadcast %16 : vector<2x1xf32> to vector<2x256xf32>
    %77 = arith.addf %75, %76 : vector<2x256xf32>
    %cst_32 = arith.constant 0.000000e+00 : f32
    %78 = vector.broadcast %cst_32 : f32 to vector<2x256xf32>
    %79 = arith.maximumf %77, %78 : vector<2x256xf32>
    %cst_33 = arith.constant dense<0.000000e+00> : vector<8x256xf32>
    %80 = tpu.matmul %12, %79, %cst_33 {dimension_numbers = #tpu.dot_dimension_numbers<[1], [0], [0], [1], [0, 0, 1, 1], [], []>} : vector<8x2xf32>, vector<2x256xf32>, vector<8x256xf32> -> vector<8x256xf32>
    %81 = vector.broadcast %13 : vector<8x1xf32> to vector<8x256xf32>
    %82 = arith.addf %80, %81 : vector<8x256xf32>
    %cst_34 = arith.constant 0.000000e+00 : f32
    %83 = vector.broadcast %cst_34 : f32 to vector<8x256xf32>
    %84 = arith.maximumf %82, %83 : vector<8x256xf32>
    %cst_35 = arith.constant 5.000000e-01 : f32
    %85 = vector.broadcast %cst_35 : f32 to vector<8x256xf32>
    %86 = arith.mulf %85, %84 : vector<8x256xf32>
    %87 = math.tanh %86 : vector<8x256xf32>
    %cst_36 = arith.constant 1.000000e+00 : f32
    %88 = vector.broadcast %cst_36 : f32 to vector<8x256xf32>
    %89 = arith.addf %87, %88 : vector<8x256xf32>
    %cst_37 = arith.constant 5.000000e-01 : f32
    %90 = vector.broadcast %cst_37 : f32 to vector<8x256xf32>
    %91 = arith.mulf %90, %89 : vector<8x256xf32>
    %c0_38 = arith.constant 0 : index
    %c0_39 = arith.constant 0 : index
    %92 = vector.load %arg6[%c0_38, %c0_39] : memref<32x8xf32, #tpu.memory_space<vmem>>, vector<32x8xf32>
    %93 = vector.broadcast %54 : vector<8x1xf32> to vector<8x256xf32>
    %94 = arith.mulf %93, %91 : vector<8x256xf32>
    %cst_40 = arith.constant dense<0.000000e+00> : vector<32x256xf32>
    %95 = tpu.matmul %92, %94, %cst_40 {dimension_numbers = #tpu.dot_dimension_numbers<[1], [0], [0], [1], [0, 0, 1, 1], [], []>} : vector<32x8xf32>, vector<8x256xf32>, vector<32x256xf32> -> vector<32x256xf32>
    %96 = arith.mulf %41, %95 : vector<32x256xf32>
    %c0_41 = arith.constant 0 : index
    %c0_42 = arith.constant 0 : index
    %97 = vector.load %arg10[%c0_41, %c0_42] : memref<32x256xf32, #tpu.memory_space<vmem>>, vector<32x256xf32>
    tpu.vector_store %arg10[%c0_41, %c0_42], %96 {strides = array<i32>} : memref<32x256xf32, #tpu.memory_space<vmem>>, vector<32x256xf32>,
    return
  }
}

</mosaic_0001>

<llo_original>
// kernel: tpu_custom_call.1
$region0: #{tpu_custom_call.1}
  #allocation0 [shape = 'u32[]', space=smem, size = 0x4, offset = 0x4, fixed_abs, tag = 'smem constant byte address 0x4 - core index']
  #allocation1 [shape = 'u32[144,128]{1,0:T(1,128)}', space=vmem, size = 0x12000, scoped, tag = 'internal scratch']
  %s0 = inlined_call_operand.hbm [shape: f32[32,256], index: 0, kind: input, shape index: {}, may-alias: {0,10}]
  %s1 = inlined_call_operand.vmem [shape: f32[32,35], index: 1, kind: input, shape index: {}]
  %s2 = inlined_call_operand.vmem [shape: f32[1,18], index: 2, kind: input, shape index: {}]
  %s3 = inlined_call_operand.vmem [shape: f32[8,6], index: 3, kind: input, shape index: {}]
  %s4 = inlined_call_operand.vmem [shape: f32[2,9], index: 4, kind: input, shape index: {}]
  %s5 = inlined_call_operand.vmem [shape: f32[8,32], index: 5, kind: input, shape index: {}]
  %s6 = inlined_call_operand.vmem [shape: f32[32,8], index: 6, kind: input, shape index: {}]
  %s7 = inlined_call_operand.vmem [shape: bf16[256,128], index: 7, kind: input, shape index: {}]
  %s8 = inlined_call_operand.hbm [shape: bf16[128,256], index: 8, kind: input, shape index: {}]
  %s9 = inlined_call_operand.vmem [shape: f32[2], index: 9, kind: input, shape index: {}]
  %s10 = inlined_call_operand.hbm [shape: f32[32,256], index: 10, kind: output, shape index: {}, may-alias: {0,10}]
  %s11 = sld [smem:[#allocation0]]
  $region62: #{tpu_custom_call.1} parent=0
    _
  %s13 = ssub.s32 1, %s11
  %s14 = scalar_select 0, %s13, %s11
  $region1: #{tpu_custom_call.1} parent=0
    #allocation2 [shape = 'u8[32768]{0}', space=vmem, size = 0x8000, scoped, tag = 'input window, operand 0, single buffered']
    #allocation3 [shape = 's32[1]{0}', space=sflag, size = 0x4, scoped, tag = 'scoped memory for tpu_custom_call.1']
    #allocation4 [shape = 's32[1]{0}', space=sflag, size = 0x4, scoped, tag = 'scoped memory for tpu_custom_call.1']
    #allocation5 [shape = 's32[1]{0}', space=sflag, size = 0x4, scoped, tag = 'scoped memory for tpu_custom_call.1']
    #allocation6 [shape = 'u8[65536]{0}', space=vmem, size = 0x10000, scoped, tag = 'input window, operand 8, single buffered']
    #allocation7 [shape = 's32[1]{0}', space=sflag, size = 0x4, scoped, tag = 'scoped memory for tpu_custom_call.1']
    #allocation8 [shape = 'u8[512]{0}', space=smem, size = 0x200, scoped, tag = 'input window, operand 9, single buffered']
    #allocation9 [shape = 'u8[32768]{0}', space=vmem, size = 0x8000, scoped, tag = 'output window, operand 0, single buffered']
    %15 = vsyncpa [#allocation3], 0
    %16 = vsyncpa [#allocation7], 0
    %17 = vsyncpa [#allocation5], 0
    %18 = vsyncpa [#allocation4], 0
    // Predicated region
    $region2: #{tpu_custom_call.1} parent=1 // pred_check
      _
    $region3: #{tpu_custom_call.1} parent=1 // pred_check_branch
      %20 = sbr.rel (0) target = $region5
    $region4: #{tpu_custom_call.1} parent=1 // pred_region
      %s22 = ssub.s32 1024, 1024
      %23 = vsyncadd [#allocation3], %s22
      %s24 = sshll.u32 [#allocation2], 4
      %s25 = int_to_ptr.vmem [resolvable:$true] %s24
      %30 = dma.hbm_to_vmem [thread:$0]  %s0, 1024, %s25, [#allocation3], 256, 256, 16
    $region5: #{tpu_custom_call.1} parent=1 // pred_fallthru
      _
    // Predicated region
    $region6: #{tpu_custom_call.1} parent=1 // pred_check
      _
    $region7: #{tpu_custom_call.1} parent=1 // pred_check_branch
      %32 = sbr.rel (0) target = $region9
    $region8: #{tpu_custom_call.1} parent=1 // pred_region
      _
    $region9: #{tpu_custom_call.1} parent=1 // pred_fallthru
      _
    // Predicated region
    $region10: #{tpu_custom_call.1} parent=1 // pred_check
      _
    $region11: #{tpu_custom_call.1} parent=1 // pred_check_branch
      %34 = sbr.rel (0) target = $region13
    $region12: #{tpu_custom_call.1} parent=1 // pred_region
      _
    $region13: #{tpu_custom_call.1} parent=1 // pred_fallthru
      _
    // Predicated region
    $region14: #{tpu_custom_call.1} parent=1 // pred_check
      _
    $region15: #{tpu_custom_call.1} parent=1 // pred_check_branch
      %36 = sbr.rel (0) target = $region17
    $region16: #{tpu_custom_call.1} parent=1 // pred_region
      _
    $region17: #{tpu_custom_call.1} parent=1 // pred_fallthru
      _
    // Predicated region
    $region18: #{tpu_custom_call.1} parent=1 // pred_check
      _
    $region19: #{tpu_custom_call.1} parent=1 // pred_check_branch
      %38 = sbr.rel (0) target = $region21
    $region20: #{tpu_custom_call.1} parent=1 // pred_region
      _
    $region21: #{tpu_custom_call.1} parent=1 // pred_fallthru
      _
    // Predicated region
    $region22: #{tpu_custom_call.1} parent=1 // pred_check
      _
    $region23: #{tpu_custom_call.1} parent=1 // pred_check_branch
      %40 = sbr.rel (0) target = $region25
    $region24: #{tpu_custom_call.1} parent=1 // pred_region
      _
    $region25: #{tpu_custom_call.1} parent=1 // pred_fallthru
      _
    // Predicated region
    $region26: #{tpu_custom_call.1} parent=1 // pred_check
      _
    $region27: #{tpu_custom_call.1} parent=1 // pred_check_branch
      %42 = sbr.rel (0) target = $region29
    $region28: #{tpu_custom_call.1} parent=1 // pred_region
      _
    $region29: #{tpu_custom_call.1} parent=1 // pred_fallthru
      _
    // Predicated region
    $region30: #{tpu_custom_call.1} parent=1 // pred_check
      _
    $region31: #{tpu_custom_call.1} parent=1 // pred_check_branch
      %44 = sbr.rel (0) target = $region33
    $region32: #{tpu_custom_call.1} parent=1 // pred_region
      _
    $region33: #{tpu_custom_call.1} parent=1 // pred_fallthru
      _
    // Predicated region
    $region34: #{tpu_custom_call.1} parent=1 // pred_check
      _
    $region35: #{tpu_custom_call.1} parent=1 // pred_check_branch
      %46 = sbr.rel (0) target = $region37
    $region36: #{tpu_custom_call.1} parent=1 // pred_region
      %s48 = ssub.s32 2048, 2048
      %49 = vsyncadd [#allocation7], %s48
      %s50 = sshll.u32 [#allocation6], 4
      %s51 = int_to_ptr.vmem [resolvable:$true] %s50
      %56 = dma.hbm_to_vmem [thread:$0]  %s8, 2048, %s51, [#allocation7], 128, 128, 8
    $region37: #{tpu_custom_call.1} parent=1 // pred_fallthru
      _
    // Predicated region
    $region38: #{tpu_custom_call.1} parent=1 // pred_check
      _
    $region39: #{tpu_custom_call.1} parent=1 // pred_check_branch
      %58 = sbr.rel (0) target = $region41
    $region40: #{tpu_custom_call.1} parent=1 // pred_region
      %s60 = ssub.s32 16, 16
      %61 = vsyncadd [#allocation5], %s60
      %s63 = sshll.u32 %s9, 4
      %s64 = int_to_ptr.vmem [resolvable:$true] %s63
      %66 = dma.vmem_to_smem %s64, 16, [#allocation8], [#allocation5]
    $region41: #{tpu_custom_call.1} parent=1 // pred_fallthru
      _
    // Predicated region
    $region42: #{tpu_custom_call.1} parent=1 // pred_check
      _
    $region43: #{tpu_custom_call.1} parent=1 // pred_check_branch
      %68 = sbr.rel (0) target = $region45
    $region44: #{tpu_custom_call.1} parent=1 // pred_region
      %69 = dma.done [#allocation3], 1024
    $region45: #{tpu_custom_call.1} parent=1 // pred_fallthru
      _
    // Predicated region
    $region46: #{tpu_custom_call.1} parent=1 // pred_check
      _
    $region47: #{tpu_custom_call.1} parent=1 // pred_check_branch
      %71 = sbr.rel (0) target = $region49
    $region48: #{tpu_custom_call.1} parent=1 // pred_region
      %72 = dma.done [#allocation7], 2048
    $region49: #{tpu_custom_call.1} parent=1 // pred_fallthru
      _
    // Predicated region
    $region50: #{tpu_custom_call.1} parent=1 // pred_check
      _
    $region51: #{tpu_custom_call.1} parent=1 // pred_check_branch
      %74 = sbr.rel (0) target = $region53
    $region52: #{tpu_custom_call.1} parent=1 // pred_region
      %75 = dma.done [#allocation5], 16
    $region53: #{tpu_custom_call.1} parent=1 // pred_fallthru
      _
    %76 = sfence
    %v78 = vld [vmem:[#allocation2] sm:$0xff]
    %v79 = vld [vmem:[#allocation2 + $0x8] sm:$0xff]
    %v80 = vld [vmem:[#allocation2 + $0x10] sm:$0xff]
    %v81 = vld [vmem:[#allocation2 + $0x18] sm:$0xff]
    %v82 = vld [vmem:[#allocation2 + $0x20] sm:$0xff]
    %v83 = vld [vmem:[#allocation2 + $0x28] sm:$0xff]
    %v84 = vld [vmem:[#allocation2 + $0x30] sm:$0xff]
    %v85 = vld [vmem:[#allocation2 + $0x38] sm:$0xff]
    %v86 = vld [vmem:[%s1] sm:$0xff]
    %v87 = vld [vmem:[%s1 + $0x8] sm:$0xff]
    %v88 = vld [vmem:[%s1 + $0x10] sm:$0xff]
    %v89 = vld [vmem:[%s1 + $0x18] sm:$0xff]
    %v90 = vld [vmem:[%s2] sm:$0x1]
    %v91 = vld [vmem:[%s3] sm:$0xff]
    %v92 = vld [vmem:[%s4] sm:$0x3]
    %v93 = vadd.f32 %v78, %v79
    %94 = vadd.xlane.f32.xlu0 %v93
    %v95 = vpop.xlane.xlu0 %94
    %v96 = vadd.f32 %v80, %v81
    %97 = vadd.xlane.f32.xlu0 %v96
    %v98 = vpop.xlane.xlu0 %97
    %v99 = vadd.f32 %v82, %v83
    %100 = vadd.xlane.f32.xlu0 %v99
    %v101 = vpop.xlane.xlu0 %100
    %v102 = vadd.f32 %v84, %v85
    %103 = vadd.xlane.f32.xlu0 %v102
    %v104 = vpop.xlane.xlu0 %103
    %v105 = vrcp.pop 256.0
    %v106 = vmul.f32 %v95, %v105
    %v107 = vmul.f32 %v98, %v105
    %v108 = vmul.f32 %v101, %v105
    %v109 = vmul.f32 %v104, %v105
    %v110 = vmul.f32 %v86, %v106
    %v111 = vmul.f32 %v87, %v107
    %v112 = vmul.f32 %v88, %v108
    %v113 = vmul.f32 %v89, %v109
    %vm114 = vcmask 130048
    %v115 = vsel %vm114, %v110, 0.0
    %v116 = vsel %vm114, %v111, 0.0
    %v117 = vadd.f32 %v115, %v116
    %v118 = vsel %vm114, %v112, 0.0
    %v119 = vadd.f32 %v117, %v118
    %v120 = vsel %vm114, %v113, 0.0
    %v121 = vadd.f32 %v119, %v120
    %v122 = vrot.slane %v121, 4
    %v123 = vadd.f32 %v121, %v122
    %v124 = vrot.slane %v123, 2
    %v125 = vadd.f32 %v123, %v124
    %v126 = vrot.slane %v125, 1
    %v127 = vadd.f32 %v125, %v126
    %v128 = vadd.f32 %v127, %v90
    %v129 = vmax.f32 %v128, 0.0
    %v130 = vlaneseq
    %v131 = vshrl.u32 %v130, 7
    %v132 = vsub.s32 0, %v131
    %v133 = vrot.slane %v129, %v132
    %135 = vrot.lane.b32.xlu0 %v133, 16
    %v136 = vpop.permute.xlu0 %135
    %v138 = vmul.f32 %v86, %v136
    %v139 = vmul.f32 %v87, %v136
    %v140 = vmul.f32 %v88, %v136
    %v141 = vmul.f32 %v89, %v136
    %146 = vrot.lane.b32.xlu0 %v138, 112
    %v147 = vpop.permute.xlu0 %146
    %148 = vrot.lane.b32.xlu0 %v139, 112
    %v149 = vpop.permute.xlu0 %148
    %150 = vrot.lane.b32.xlu0 %v140, 112
    %v151 = vpop.permute.xlu0 %150
    %152 = vrot.lane.b32.xlu0 %v141, 112
    %v153 = vpop.permute.xlu0 %152
    %v158 = vsel %vm114, %v147, 0.0
    %159 = vadd.xlane.f32.xlu0 %v158
    %v160 = vpop.xlane.xlu0 %159
    %v161 = vsel %vm114, %v149, 0.0
    %162 = vadd.xlane.f32.xlu0 %v161
    %v163 = vpop.xlane.xlu0 %162
    %v164 = vsel %vm114, %v151, 0.0
    %165 = vadd.xlane.f32.xlu0 %v164
    %v166 = vpop.xlane.xlu0 %165
    %v167 = vsel %vm114, %v153, 0.0
    %168 = vadd.xlane.f32.xlu0 %v167
    %v169 = vpop.xlane.xlu0 %168
    %v170 = vadd.f32 %v160, %v86
    %v171 = vadd.f32 %v163, %v87
    %v172 = vadd.f32 %v166, %v88
    %v173 = vadd.f32 %v169, %v89
    %v174 = vmul.f32 %v170, 0.5
    %v175 = vmul.f32 %v171, 0.5
    %v176 = vmul.f32 %v172, 0.5
    %v177 = vmul.f32 %v173, 0.5
    %v178 = vtanh.pop %v174
    %v179 = vtanh.pop %v175
    %v180 = vtanh.pop %v176
    %v181 = vtanh.pop %v177
    %v182 = vadd.f32 %v178, 1.0
    %v183 = vadd.f32 %v179, 1.0
    %v184 = vadd.f32 %v180, 1.0
    %v185 = vadd.f32 %v181, 1.0
    %v186 = vmul.f32 %v182, 0.5
    %v187 = vmul.f32 %v183, 0.5
    %v188 = vmul.f32 %v184, 0.5
    %v189 = vmul.f32 %v185, 0.5
    %191 = vset.pattern.permute.xlu0 34
    %192 = vperm.xlu0 %191, %v186
    %v193 = vpop.permute.xlu0 %192
    %196 = vset.pattern.permute.xlu0 34
    %197 = vperm.xlu0 %196, %v187
    %v198 = vpop.permute.xlu0 %197
    %201 = vset.pattern.permute.xlu0 34
    %202 = vperm.xlu0 %201, %v188
    %v203 = vpop.permute.xlu0 %202
    %206 = vset.pattern.permute.xlu0 34
    %207 = vperm.xlu0 %206, %v189
    %v208 = vpop.permute.xlu0 %207
    %v210 = vmul.f32 %v78, %v193
    %v211 = vmul.f32 %v79, %v193
    %v212 = vmul.f32 %v80, %v198
    %v213 = vmul.f32 %v81, %v198
    %v214 = vmul.f32 %v82, %v203
    %v215 = vmul.f32 %v83, %v203
    %v216 = vmul.f32 %v84, %v208
    %v217 = vmul.f32 %v85, %v208
    %v218 = vmul.f32 %v186, %v106
    %v219 = vmul.f32 %v187, %v107
    %v220 = vmul.f32 %v188, %v108
    %v221 = vmul.f32 %v189, %v109
    %223 = vset.pattern.permute.xlu0 34
    %224 = vperm.xlu0 %223, %v218
    %v225 = vpop.permute.xlu0 %224
    %228 = vset.pattern.permute.xlu0 34
    %229 = vperm.xlu0 %228, %v219
    %v230 = vpop.permute.xlu0 %229
    %233 = vset.pattern.permute.xlu0 34
    %234 = vperm.xlu0 %233, %v220
    %v235 = vpop.permute.xlu0 %234
    %238 = vset.pattern.permute.xlu0 34
    %239 = vperm.xlu0 %238, %v221
    %v240 = vpop.permute.xlu0 %239
    %v242 = vmul.f32 %v86, %v225
    %v243 = vmul.f32 %v87, %v230
    %v244 = vmul.f32 %v88, %v235
    %v245 = vmul.f32 %v89, %v240
    %vm246 = vcmask 277760
    %v247 = vsel %vm246, %v242, 0.0
    %v248 = vsel %vm246, %v243, 0.0
    %v249 = vadd.f32 %v247, %v248
    %v250 = vsel %vm246, %v244, 0.0
    %v251 = vadd.f32 %v249, %v250
    %v252 = vsel %vm246, %v245, 0.0
    %v253 = vadd.f32 %v251, %v252
    %v254 = vrot.slane %v253, 4
    %v255 = vadd.f32 %v253, %v254
    %v256 = vrot.slane %v255, 2
    %v257 = vadd.f32 %v255, %v256
    %v258 = vrot.slane %v257, 1
    %v259 = vadd.f32 %v257, %v258
    %v261 = vlaneseq
    %v262 = vshrl.u32 %v261, 7
    %v263 = vsub.s32 0, %v262
    %v264 = vrot.slane %v90, %v263
    %265 = vrot.lane.b32.xlu0 %v264, 16
    %v266 = vpop.permute.xlu0 %265
    %v268 = vadd.f32 %v259, %v266
    %v269 = vmax.f32 %v268, 0.0
    %v270 = vlaneseq
    %v271 = vshrl.u32 %v270, 7
    %v272 = vsub.s32 0, %v271
    %v273 = vrot.slane %v269, %v272
    %275 = vrot.lane.b32.xlu0 %v273, 96
    %v276 = vpop.permute.xlu0 %275
    %v278 = vmul.f32 %v91, %v276
    %vm279 = vcmask 15360
    %v280 = vsel %vm279, %v278, 0.0
    %281 = vadd.xlane.f32.xlu0 %v280
    %v282 = vpop.xlane.xlu0 %281
    %v283 = vadd.f32 %v282, %v91
    %v284 = vld [vmem:[%s5] sm:$0xff]
    %vm285 = vcmask 261120
    %v287 = vsel %vm285, %v284, 0
    %289 = vmatprep.subr.mxu0 %v211
    %290 = vmatpush1.msra.mxu0 %v210
    %291 = vmatprep.subr.mxu0 %v213
    %292 = vmatpush1.msra.mxu0 %v212
    %293 = vmatprep.subr.mxu0 %v215
    %294 = vmatpush1.msra.mxu0 %v214
    %295 = vmatprep.subr.mxu0 %v217
    %296 = vmatpush1.msra.mxu0 %v216
    %297 = vmatprep.subr.mxu0 0.0
    %298 = vmatpush1.msra.mxu0 0.0
    %299 = vmatprep.subr.mxu0 0.0
    %300 = vmatpush1.msra.mxu0 0.0
    %301 = vmatprep.subr.mxu0 0.0
    %302 = vmatpush1.msra.mxu0 0.0
    %303 = vmatprep.subr.mxu0 0.0
    %304 = vmatpush1.msra.mxu0 0.0
    %305 = vmatprep.subr.mxu0 0.0
    %306 = vmatpush1.msra.mxu0 0.0
    %307 = vmatprep.subr.mxu0 0.0
    %308 = vmatpush1.msra.mxu0 0.0
    %309 = vmatprep.subr.mxu0 0.0
    %310 = vmatpush1.msra.mxu0 0.0
    %311 = vmatprep.subr.mxu0 0.0
    %312 = vmatpush1.msra.mxu0 0.0
    %313 = vmatprep.subr.mxu0 0.0
    %314 = vmatpush1.msra.mxu0 0.0
    %315 = vmatprep.subr.mxu0 0.0
    %316 = vmatpush1.msra.mxu0 0.0
    %317 = vmatprep.subr.mxu0 0.0
    %318 = vmatpush1.msra.mxu0 0.0
    %319 = vmatprep.subr.mxu0 0.0
    %320 = vmatpush1.msra.mxu0 0.0
    %321 = vmatprep.subr.mxu0 0.0
    %322 = vmatpush1.msra.mxu0 0.0
    %323 = vmatprep.subr.mxu0 0.0
    %324 = vmatpush1.msra.mxu0 0.0
    %325 = vmatprep.subr.mxu0 0.0
    %326 = vmatpush1.msra.mxu0 0.0
    %327 = vmatprep.subr.mxu0 0.0
    %328 = vmatpush1.msra.mxu0 0.0
    %329 = vmatprep.subr.mxu0 0.0
    %330 = vmatpush1.msra.mxu0 0.0
    %331 = vmatprep.subr.mxu0 0.0
    %332 = vmatpush1.msra.mxu0 0.0
    %333 = vmatprep.subr.mxu0 0.0
    %334 = vmatpush1.msra.mxu0 0.0
    %335 = vmatprep.subr.mxu0 0.0
    %336 = vmatpush1.msra.mxu0 0.0
    %337 = vmatprep.subr.mxu0 0.0
    %338 = vmatpush1.msra.mxu0 0.0
    %339 = vmatprep.subr.mxu0 0.0
    %340 = vmatpush1.msra.mxu0 0.0
    %341 = vmatprep.subr.mxu0 0.0
    %342 = vmatpush1.msra.mxu0 0.0
    %343 = vmatprep.subr.mxu0 0.0
    %344 = vmatpush1.msra.mxu0 0.0
    %345 = vmatprep.subr.mxu0 0.0
    %346 = vmatpush1.msra.mxu0 0.0
    %347 = vmatprep.subr.mxu0 0.0
    %348 = vmatpush1.msra.mxu0 0.0
    %349 = vmatprep.subr.mxu0 0.0
    %350 = vmatpush1.msra.mxu0 0.0
    %351 = vmatprep.subr.mxu0 0.0
    %352 = vmatpush1.msra.mxu0 0.0
    %353 = vmatprep.mubr.f32.mxu0 0.0
    %354 = vmatmul.mubr.f32.gmra.mrb[0].mxu0 %v287
    %v355 = vpop.f32.mrb[0].mxu0
    %v356 = vadd.f32 0.0, %v355
    %v357 = vpop.f32.mrb[0].mxu0
    %v358 = vadd.f32 0.0, %v357
    %359 = vdwg.mxu0
    %v360 = vpack.c.bf16 %v356, %v356
    %v361 = vpack.c.bf16 %v358, %v358
    %v362 = vld [vmem:[%s7] sm:$0xf]
    %v363 = vld [vmem:[%s7 + $0x4] sm:$0xf]
    %v364 = vld [vmem:[%s7 + $0x8] sm:$0xf]
    %v365 = vld [vmem:[%s7 + $0xc] sm:$0xf]
    %v366 = vld [vmem:[%s7 + $0x10] sm:$0xf]
    %v367 = vld [vmem:[%s7 + $0x14] sm:$0xf]
    %v368 = vld [vmem:[%s7 + $0x18] sm:$0xf]
    %v369 = vld [vmem:[%s7 + $0x1c] sm:$0xf]
    %v370 = vld [vmem:[%s7 + $0x20] sm:$0xf]
    %v371 = vld [vmem:[%s7 + $0x24] sm:$0xf]
    %v372 = vld [vmem:[%s7 + $0x28] sm:$0xf]
    %v373 = vld [vmem:[%s7 + $0x2c] sm:$0xf]
    %v374 = vld [vmem:[%s7 + $0x30] sm:$0xf]
    %v375 = vld [vmem:[%s7 + $0x34] sm:$0xf]
    %v376 = vld [vmem:[%s7 + $0x38] sm:$0xf]
    %v377 = vld [vmem:[%s7 + $0x3c] sm:$0xf]
    %v378 = vld [vmem:[%s7 + $0x40] sm:$0xf]
    %v379 = vld [vmem:[%s7 + $0x44] sm:$0xf]
    %v380 = vld [vmem:[%s7 + $0x48] sm:$0xf]
    %v381 = vld [vmem:[%s7 + $0x4c] sm:$0xf]
    %v382 = vld [vmem:[%s7 + $0x50] sm:$0xf]
    %v383 = vld [vmem:[%s7 + $0x54] sm:$0xf]
    %v384 = vld [vmem:[%s7 + $0x58] sm:$0xf]
    %v385 = vld [vmem:[%s7 + $0x5c] sm:$0xf]
    %v386 = vld [vmem:[%s7 + $0x60] sm:$0xf]
    %v387 = vld [vmem:[%s7 + $0x64] sm:$0xf]
    %v388 = vld [vmem:[%s7 + $0x68] sm:$0xf]
    %v389 = vld [vmem:[%s7 + $0x6c] sm:$0xf]
    %v390 = vld [vmem:[%s7 + $0x70] sm:$0xf]
    %v391 = vld [vmem:[%s7 + $0x74] sm:$0xf]
    %v392 = vld [vmem:[%s7 + $0x78] sm:$0xf]
    %v393 = vld [vmem:[%s7 + $0x7c] sm:$0xf]
    %v426 = vunpack.c.l.b16 %v362
    %v427 = vunpack.c.l.b16 %v363
    %v428 = vunpack.c.l.b16 %v364
    %v429 = vunpack.c.l.b16 %v365
    %v430 = vunpack.c.l.b16 %v366
    %v431 = vunpack.c.l.b16 %v367
    %v432 = vunpack.c.l.b16 %v368
    %v433 = vunpack.c.l.b16 %v369
    %v434 = vunpack.c.l.b16 %v370
    %v435 = vunpack.c.l.b16 %v371
    %v436 = vunpack.c.l.b16 %v372
    %v437 = vunpack.c.l.b16 %v373
    %v438 = vunpack.c.l.b16 %v374
    %v439 = vunpack.c.l.b16 %v375
    %v440 = vunpack.c.l.b16 %v376
    %v441 = vunpack.c.l.b16 %v377
    %v442 = vunpack.c.l.b16 %v378
    %v443 = vunpack.c.l.b16 %v379
    %v444 = vunpack.c.l.b16 %v380
    %v445 = vunpack.c.l.b16 %v381
    %v446 = vunpack.c.l.b16 %v382
    %v447 = vunpack.c.l.b16 %v383
    %v448 = vunpack.c.l.b16 %v384
    %v449 = vunpack.c.l.b16 %v385
    %v450 = vunpack.c.l.b16 %v386
    %v451 = vunpack.c.l.b16 %v387
    %v452 = vunpack.c.l.b16 %v388
    %v453 = vunpack.c.l.b16 %v389
    %v454 = vunpack.c.l.b16 %v390
    %v455 = vunpack.c.l.b16 %v391
    %v456 = vunpack.c.l.b16 %v392
    %v457 = vunpack.c.l.b16 %v393
    %v458 = vpack.c.b16 %v427, %v426
    %v459 = vpack.c.b16 %v429, %v428
    %v460 = vpack.c.b16 %v431, %v430
    %v461 = vpack.c.b16 %v433, %v432
    %v462 = vpack.c.b16 %v435, %v434
    %v463 = vpack.c.b16 %v437, %v436
    %v464 = vpack.c.b16 %v439, %v438
    %v465 = vpack.c.b16 %v441, %v440
    %v466 = vpack.c.b16 %v443, %v442
    %v467 = vpack.c.b16 %v445, %v444
    %v468 = vpack.c.b16 %v447, %v446
    %v469 = vpack.c.b16 %v449, %v448
    %v470 = vpack.c.b16 %v451, %v450
    %v471 = vpack.c.b16 %v453, %v452
    %v472 = vpack.c.b16 %v455, %v454
    %v473 = vpack.c.b16 %v457, %v456
    %490 = vmatprep.subr.bf16.mxu0 0
    %491 = vmatpush1.bf16.msra.mxu0 %v458
    %492 = vmatprep.subr.bf16.mxu0 0
    %493 = vmatpush1.bf16.msra.mxu0 %v459
    %494 = vmatprep.subr.bf16.mxu0 0
    %495 = vmatpush1.bf16.msra.mxu0 %v460
    %496 = vmatprep.subr.bf16.mxu0 0
    %497 = vmatpush1.bf16.msra.mxu0 %v461
    %498 = vmatprep.subr.bf16.mxu0 0
    %499 = vmatpush1.bf16.msra.mxu0 %v462
    %500 = vmatprep.subr.bf16.mxu0 0
    %501 = vmatpush1.bf16.msra.mxu0 %v463
    %502 = vmatprep.subr.bf16.mxu0 0
    %503 = vmatpush1.bf16.msra.mxu0 %v464
    %504 = vmatprep.subr.bf16.mxu0 0
    %505 = vmatpush1.bf16.msra.mxu0 %v465
    %506 = vmatprep.subr.bf16.mxu0 0
    %507 = vmatpush1.bf16.msra.mxu0 %v466
    %508 = vmatprep.subr.bf16.mxu0 0
    %509 = vmatpush1.bf16.msra.mxu0 %v467
    %510 = vmatprep.subr.bf16.mxu0 0
    %511 = vmatpush1.bf16.msra.mxu0 %v468
    %512 = vmatprep.subr.bf16.mxu0 0
    %513 = vmatpush1.bf16.msra.mxu0 %v469
    %514 = vmatprep.subr.bf16.mxu0 0
    %515 = vmatpush1.bf16.msra.mxu0 %v470
    %516 = vmatprep.subr.bf16.mxu0 0
    %517 = vmatpush1.bf16.msra.mxu0 %v471
    %518 = vmatprep.subr.bf16.mxu0 0
    %519 = vmatpush1.bf16.msra.mxu0 %v472
    %520 = vmatprep.subr.bf16.mxu0 0
    %521 = vmatpush1.bf16.msra.mxu0 %v473
    %522 = vmatprep.mubr.bf16.mxu0 %v361
    %523 = vmatmul.mubr.bf16.gmra.mrb[0].mxu0 %v360
    %v524 = vpop.f32.mrb[0].mxu0
    %v525 = vadd.f32 0.0, %v524
    %v526 = vpop.f32.mrb[0].mxu0
    %v527 = vpop.f32.mrb[0].mxu0
    %v528 = vpop.f32.mrb[0].mxu0
    %529 = vdwg.mxu0
    %531 = vset.pattern.permute.xlu0 2
    %532 = vperm.xlu0 %531, %v283
    %v533 = vpop.permute.xlu0 %532
    %v535 = vmul.f32 %v533, %v525
    %s536 = sld [smem:[#allocation8]]
    %v537 = vstv %s536
    %v538 = vadd.f32 %v535, %v537
    %v539 = vmax.f32 %v538, 0.0
    %v540 = vpack.c.bf16 %v539, %v539
    %v541 = vld [vmem:[#allocation6] sm:$0xff]
    %v542 = vld [vmem:[#allocation6 + $0x8] sm:$0xff]
    %v543 = vld [vmem:[#allocation6 + $0x10] sm:$0xff]
    %v544 = vld [vmem:[#allocation6 + $0x18] sm:$0xff]
    %v545 = vld [vmem:[#allocation6 + $0x20] sm:$0xff]
    %v546 = vld [vmem:[#allocation6 + $0x28] sm:$0xff]
    %v547 = vld [vmem:[#allocation6 + $0x30] sm:$0xff]
    %v548 = vld [vmem:[#allocation6 + $0x38] sm:$0xff]
    %v549 = vld [vmem:[#allocation6 + $0x40] sm:$0xff]
    %v550 = vld [vmem:[#allocation6 + $0x48] sm:$0xff]
    %v551 = vld [vmem:[#allocation6 + $0x50] sm:$0xff]
    %v552 = vld [vmem:[#allocation6 + $0x58] sm:$0xff]
    %v553 = vld [vmem:[#allocation6 + $0x60] sm:$0xff]
    %v554 = vld [vmem:[#allocation6 + $0x68] sm:$0xff]
    %v555 = vld [vmem:[#allocation6 + $0x70] sm:$0xff]
    %v556 = vld [vmem:[#allocation6 + $0x78] sm:$0xff]
    %s557 = sld [smem:[#allocation8 + $0x1]]
    %v558 = vstv %s557
    %v575 = vunpack.c.l.b16 %v541
    %v576 = vunpack.c.h.b16 %v541
    %v577 = vunpack.c.l.b16 %v542
    %v578 = vunpack.c.h.b16 %v542
    %v579 = vunpack.c.l.b16 %v543
    %v580 = vunpack.c.h.b16 %v543
    %v581 = vunpack.c.l.b16 %v544
    %v582 = vunpack.c.h.b16 %v544
    %v583 = vunpack.c.l.b16 %v545
    %v584 = vunpack.c.h.b16 %v545
    %v585 = vunpack.c.l.b16 %v546
    %v586 = vunpack.c.h.b16 %v546
    %v587 = vunpack.c.l.b16 %v547
    %v588 = vunpack.c.h.b16 %v547
    %v589 = vunpack.c.l.b16 %v548
    %v590 = vunpack.c.h.b16 %v548
    %v591 = vunpack.c.l.b16 %v549
    %v592 = vunpack.c.h.b16 %v549
    %v593 = vunpack.c.l.b16 %v550
    %v594 = vunpack.c.h.b16 %v550
    %v595 = vunpack.c.l.b16 %v551
    %v596 = vunpack.c.h.b16 %v551
    %v597 = vunpack.c.l.b16 %v552
    %v598 = vunpack.c.h.b16 %v552
    %v599 = vunpack.c.l.b16 %v553
    %v600 = vunpack.c.h.b16 %v553
    %v601 = vunpack.c.l.b16 %v554
    %v602 = vunpack.c.h.b16 %v554
    %v603 = vunpack.c.l.b16 %v555
    %v604 = vunpack.c.h.b16 %v555
    %v605 = vunpack.c.l.b16 %v556
    %v606 = vunpack.c.h.b16 %v556
    %v607 = vpack.c.b16 %v577, %v575
    %v608 = vpack.c.b16 %v578, %v576
    %v609 = vpack.c.b16 %v581, %v579
    %v610 = vpack.c.b16 %v582, %v580
    %v611 = vpack.c.b16 %v585, %v583
    %v612 = vpack.c.b16 %v586, %v584
    %v613 = vpack.c.b16 %v589, %v587
    %v614 = vpack.c.b16 %v590, %v588
    %v615 = vpack.c.b16 %v593, %v591
    %v616 = vpack.c.b16 %v594, %v592
    %v617 = vpack.c.b16 %v597, %v595
    %v618 = vpack.c.b16 %v598, %v596
    %v619 = vpack.c.b16 %v601, %v599
    %v620 = vpack.c.b16 %v602, %v600
    %v621 = vpack.c.b16 %v605, %v603
    %v622 = vpack.c.b16 %v606, %v604
    %639 = vmatprep.subr.bf16.mxu0 %v608
    %640 = vmatpush1.bf16.msra.mxu0 %v607
    %641 = vmatprep.subr.bf16.mxu0 %v610
    %642 = vmatpush1.bf16.msra.mxu0 %v609
    %643 = vmatprep.subr.bf16.mxu0 %v612
    %644 = vmatpush1.bf16.msra.mxu0 %v611
    %645 = vmatprep.subr.bf16.mxu0 %v614
    %646 = vmatpush1.bf16.msra.mxu0 %v613
    %647 = vmatprep.subr.bf16.mxu0 %v616
    %648 = vmatpush1.bf16.msra.mxu0 %v615
    %649 = vmatprep.subr.bf16.mxu0 %v618
    %650 = vmatpush1.bf16.msra.mxu0 %v617
    %651 = vmatprep.subr.bf16.mxu0 %v620
    %652 = vmatpush1.bf16.msra.mxu0 %v619
    %653 = vmatprep.subr.bf16.mxu0 %v622
    %654 = vmatpush1.bf16.msra.mxu0 %v621
    %655 = vmatprep.subr.bf16.mxu0 0
    %656 = vmatpush1.bf16.msra.mxu0 0
    %657 = vmatprep.subr.bf16.mxu0 0
    %658 = vmatpush1.bf16.msra.mxu0 0
    %659 = vmatprep.subr.bf16.mxu0 0
    %660 = vmatpush1.bf16.msra.mxu0 0
    %661 = vmatprep.subr.bf16.mxu0 0
    %662 = vmatpush1.bf16.msra.mxu0 0
    %663 = vmatprep.subr.bf16.mxu0 0
    %664 = vmatpush1.bf16.msra.mxu0 0
    %665 = vmatprep.subr.bf16.mxu0 0
    %666 = vmatpush1.bf16.msra.mxu0 0
    %667 = vmatprep.subr.bf16.mxu0 0
    %668 = vmatpush1.bf16.msra.mxu0 0
    %669 = vmatprep.subr.bf16.mxu0 0
    %670 = vmatpush1.bf16.msra.mxu0 0
    %671 = vmatprep.mubr.bf16.mxu0 0
    %672 = vmatmul.mubr.bf16.gmra.mrb[0].mxu0 %v540
    %v673 = vpop.f32.mrb[0].mxu0
    %v674 = vadd.f32 %v558, %v673
    %v675 = vpop.f32.mrb[0].mxu0
    %v676 = vadd.f32 %v558, %v675
    %v677 = vpop.f32.mrb[0].mxu0
    %v678 = vpop.f32.mrb[0].mxu0
    %679 = vdwg.mxu0
    %v680 = vmax.f32 %v674, 0.0
    %v681 = vmax.f32 %v676, 0.0
    %683 = vset.pattern.permute.xlu0 8
    %684 = vperm.xlu0 %683, %v92
    %v685 = vpop.permute.xlu0 %684
    %vm687 = vcmask 64512
    %v688 = vsel %vm687, %v92, 0
    %690 = vmatprep.subr.mxu0 %v681
    %691 = vmatpush1.msra.mxu0 %v680
    %692 = vmatprep.subr.mxu0 0.0
    %693 = vmatpush1.msra.mxu0 0.0
    %694 = vmatprep.subr.mxu0 0.0
    %695 = vmatpush1.msra.mxu0 0.0
    %696 = vmatprep.subr.mxu0 0.0
    %697 = vmatpush1.msra.mxu0 0.0
    %698 = vmatprep.subr.mxu0 0.0
    %699 = vmatpush1.msra.mxu0 0.0
    %700 = vmatprep.subr.mxu0 0.0
    %701 = vmatpush1.msra.mxu0 0.0
    %702 = vmatprep.subr.mxu0 0.0
    %703 = vmatpush1.msra.mxu0 0.0
    %704 = vmatprep.subr.mxu0 0.0
    %705 = vmatpush1.msra.mxu0 0.0
    %706 = vmatprep.subr.mxu0 0.0
    %707 = vmatpush1.msra.mxu0 0.0
    %708 = vmatprep.subr.mxu0 0.0
    %709 = vmatpush1.msra.mxu0 0.0
    %710 = vmatprep.subr.mxu0 0.0
    %711 = vmatpush1.msra.mxu0 0.0
    %712 = vmatprep.subr.mxu0 0.0
    %713 = vmatpush1.msra.mxu0 0.0
    %714 = vmatprep.subr.mxu0 0.0
    %715 = vmatpush1.msra.mxu0 0.0
    %716 = vmatprep.subr.mxu0 0.0
    %717 = vmatpush1.msra.mxu0 0.0
    %718 = vmatprep.subr.mxu0 0.0
    %719 = vmatpush1.msra.mxu0 0.0
    %720 = vmatprep.subr.mxu0 0.0
    %721 = vmatpush1.msra.mxu0 0.0
    %722 = vmatprep.subr.mxu0 0.0
    %723 = vmatpush1.msra.mxu0 0.0
    %724 = vmatprep.subr.mxu0 0.0
    %725 = vmatpush1.msra.mxu0 0.0
    %726 = vmatprep.subr.mxu0 0.0
    %727 = vmatpush1.msra.mxu0 0.0
    %728 = vmatprep.subr.mxu0 0.0
    %729 = vmatpush1.msra.mxu0 0.0
    %730 = vmatprep.subr.mxu0 0.0
    %731 = vmatpush1.msra.mxu0 0.0
    %732 = vmatprep.subr.mxu0 0.0
    %733 = vmatpush1.msra.mxu0 0.0
    %734 = vmatprep.subr.mxu0 0.0
    %735 = vmatpush1.msra.mxu0 0.0
    %736 = vmatprep.subr.mxu0 0.0
    %737 = vmatpush1.msra.mxu0 0.0
    %738 = vmatprep.subr.mxu0 0.0
    %739 = vmatpush1.msra.mxu0 0.0
    %740 = vmatprep.subr.mxu0 0.0
    %741 = vmatpush1.msra.mxu0 0.0
    %742 = vmatprep.subr.mxu0 0.0
    %743 = vmatpush1.msra.mxu0 0.0
    %744 = vmatprep.subr.mxu0 0.0
    %745 = vmatpush1.msra.mxu0 0.0
    %746 = vmatprep.subr.mxu0 0.0
    %747 = vmatpush1.msra.mxu0 0.0
    %748 = vmatprep.subr.mxu0 0.0
    %749 = vmatpush1.msra.mxu0 0.0
    %750 = vmatprep.subr.mxu0 0.0
    %751 = vmatpush1.msra.mxu0 0.0
    %752 = vmatprep.subr.mxu0 0.0
    %753 = vmatpush1.msra.mxu0 0.0
    %754 = vmatprep.mubr.f32.mxu0 0.0
    %755 = vmatmul.mubr.f32.gmra.mrb[0].mxu0 %v688
    %v756 = vpop.f32.mrb[0].mxu0
    %v757 = vadd.f32 %v685, %v756
    %v758 = vpop.f32.mrb[0].mxu0
    %v759 = vadd.f32 %v685, %v758
    %760 = vdwg.mxu0
    %v761 = vmax.f32 %v757, 0.0
    %v762 = vmax.f32 %v759, 0.0
    %764 = vset.pattern.permute.xlu0 5
    %765 = vperm.xlu0 %764, %v91
    %v766 = vpop.permute.xlu0 %765
    %768 = vrot.lane.b32.xlu0 %v91, 125
    %v769 = vpop.permute.xlu0 %768
    %v770 = vsel %vm279, %v769, 0
    %vm772 = vcmask 1041408
    %v774 = vsel %vm772, %v761, 0
    %v777 = vsel %vm772, %v762, 0
    %779 = vmatprep.subr.mxu0 %v777
    %780 = vmatpush1.msra.mxu0 %v774
    %781 = vmatprep.subr.mxu0 0.0
    %782 = vmatpush1.msra.mxu0 0.0
    %783 = vmatprep.subr.mxu0 0.0
    %784 = vmatpush1.msra.mxu0 0.0
    %785 = vmatprep.subr.mxu0 0.0
    %786 = vmatpush1.msra.mxu0 0.0
    %787 = vmatprep.subr.mxu0 0.0
    %788 = vmatpush1.msra.mxu0 0.0
    %789 = vmatprep.subr.mxu0 0.0
    %790 = vmatpush1.msra.mxu0 0.0
    %791 = vmatprep.subr.mxu0 0.0
    %792 = vmatpush1.msra.mxu0 0.0
    %793 = vmatprep.subr.mxu0 0.0
    %794 = vmatpush1.msra.mxu0 0.0
    %795 = vmatprep.subr.mxu0 0.0
    %796 = vmatpush1.msra.mxu0 0.0
    %797 = vmatprep.subr.mxu0 0.0
    %798 = vmatpush1.msra.mxu0 0.0
    %799 = vmatprep.subr.mxu0 0.0
    %800 = vmatpush1.msra.mxu0 0.0
    %801 = vmatprep.subr.mxu0 0.0
    %802 = vmatpush1.msra.mxu0 0.0
    %803 = vmatprep.subr.mxu0 0.0
    %804 = vmatpush1.msra.mxu0 0.0
    %805 = vmatprep.subr.mxu0 0.0
    %806 = vmatpush1.msra.mxu0 0.0
    %807 = vmatprep.subr.mxu0 0.0
    %808 = vmatpush1.msra.mxu0 0.0
    %809 = vmatprep.subr.mxu0 0.0
    %810 = vmatpush1.msra.mxu0 0.0
    %811 = vmatprep.subr.mxu0 0.0
    %812 = vmatpush1.msra.mxu0 0.0
    %813 = vmatprep.subr.mxu0 0.0
    %814 = vmatpush1.msra.mxu0 0.0
    %815 = vmatprep.subr.mxu0 0.0
    %816 = vmatpush1.msra.mxu0 0.0
    %817 = vmatprep.subr.mxu0 0.0
    %818 = vmatpush1.msra.mxu0 0.0
    %819 = vmatprep.subr.mxu0 0.0
    %820 = vmatpush1.msra.mxu0 0.0
    %821 = vmatprep.subr.mxu0 0.0
    %822 = vmatpush1.msra.mxu0 0.0
    %823 = vmatprep.subr.mxu0 0.0
    %824 = vmatpush1.msra.mxu0 0.0
    %825 = vmatprep.subr.mxu0 0.0
    %826 = vmatpush1.msra.mxu0 0.0
    %827 = vmatprep.subr.mxu0 0.0
    %828 = vmatpush1.msra.mxu0 0.0
    %829 = vmatprep.subr.mxu0 0.0
    %830 = vmatpush1.msra.mxu0 0.0
    %831 = vmatprep.subr.mxu0 0.0
    %832 = vmatpush1.msra.mxu0 0.0
    %833 = vmatprep.subr.mxu0 0.0
    %834 = vmatpush1.msra.mxu0 0.0
    %835 = vmatprep.subr.mxu0 0.0
    %836 = vmatpush1.msra.mxu0 0.0
    %837 = vmatprep.subr.mxu0 0.0
    %838 = vmatpush1.msra.mxu0 0.0
    %839 = vmatprep.subr.mxu0 0.0
    %840 = vmatpush1.msra.mxu0 0.0
    %841 = vmatprep.subr.mxu0 0.0
    %842 = vmatpush1.msra.mxu0 0.0
    %843 = vmatprep.mubr.f32.mxu0 0.0
    %844 = vmatmul.mubr.f32.gmra.mrb[0].mxu0 %v770
    %v845 = vpop.f32.mrb[0].mxu0
    %v846 = vadd.f32 %v766, %v845
    %v847 = vpop.f32.mrb[0].mxu0
    %v848 = vadd.f32 %v766, %v847
    %849 = vdwg.mxu0
    %v850 = vmax.f32 %v846, 0.0
    %v851 = vmax.f32 %v848, 0.0
    %v852 = vmul.f32 %v850, 0.5
    %v853 = vmul.f32 %v851, 0.5
    %v854 = vtanh.pop %v852
    %v855 = vtanh.pop %v853
    %v856 = vadd.f32 %v854, 1.0
    %v857 = vadd.f32 %v855, 1.0
    %v858 = vmul.f32 %v856, 0.5
    %v859 = vmul.f32 %v857, 0.5
    %v860 = vld [vmem:[%s6] sm:$0xff]
    %v861 = vld [vmem:[%s6 + $0x8] sm:$0xff]
    %v862 = vld [vmem:[%s6 + $0x10] sm:$0xff]
    %v863 = vld [vmem:[%s6 + $0x18] sm:$0xff]
    %v864 = vmul.f32 %v533, %v858
    %v865 = vmul.f32 %v533, %v859
    %v867 = vsel %vm687, %v860, 0
    %v870 = vsel %vm687, %v861, 0
    %v873 = vsel %vm687, %v862, 0
    %v876 = vsel %vm687, %v863, 0
    %878 = vmatprep.subr.mxu0 %v865
    %879 = vmatpush1.msra.mxu0 %v864
    %880 = vmatprep.subr.mxu0 0.0
    %881 = vmatpush1.msra.mxu0 0.0
    %882 = vmatprep.subr.mxu0 0.0
    %883 = vmatpush1.msra.mxu0 0.0
    %884 = vmatprep.subr.mxu0 0.0
    %885 = vmatpush1.msra.mxu0 0.0
    %886 = vmatprep.subr.mxu0 0.0
    %887 = vmatpush1.msra.mxu0 0.0
    %888 = vmatprep.subr.mxu0 0.0
    %889 = vmatpush1.msra.mxu0 0.0
    %890 = vmatprep.subr.mxu0 0.0
    %891 = vmatpush1.msra.mxu0 0.0
    %892 = vmatprep.subr.mxu0 0.0
    %893 = vmatpush1.msra.mxu0 0.0
    %894 = vmatprep.subr.mxu0 0.0
    %895 = vmatpush1.msra.mxu0 0.0
    %896 = vmatprep.subr.mxu0 0.0
    %897 = vmatpush1.msra.mxu0 0.0
    %898 = vmatprep.subr.mxu0 0.0
    %899 = vmatpush1.msra.mxu0 0.0
    %900 = vmatprep.subr.mxu0 0.0
    %901 = vmatpush1.msra.mxu0 0.0
    %902 = vmatprep.subr.mxu0 0.0
    %903 = vmatpush1.msra.mxu0 0.0
    %904 = vmatprep.subr.mxu0 0.0
    %905 = vmatpush1.msra.mxu0 0.0
    %906 = vmatprep.subr.mxu0 0.0
    %907 = vmatpush1.msra.mxu0 0.0
    %908 = vmatprep.subr.mxu0 0.0
    %909 = vmatpush1.msra.mxu0 0.0
    %910 = vmatprep.subr.mxu0 0.0
    %911 = vmatpush1.msra.mxu0 0.0
    %912 = vmatprep.subr.mxu0 0.0
    %913 = vmatpush1.msra.mxu0 0.0
    %914 = vmatprep.subr.mxu0 0.0
    %915 = vmatpush1.msra.mxu0 0.0
    %916 = vmatprep.subr.mxu0 0.0
    %917 = vmatpush1.msra.mxu0 0.0
    %918 = vmatprep.subr.mxu0 0.0
    %919 = vmatpush1.msra.mxu0 0.0
    %920 = vmatprep.subr.mxu0 0.0
    %921 = vmatpush1.msra.mxu0 0.0
    %922 = vmatprep.subr.mxu0 0.0
    %923 = vmatpush1.msra.mxu0 0.0
    %924 = vmatprep.subr.mxu0 0.0
    %925 = vmatpush1.msra.mxu0 0.0
    %926 = vmatprep.subr.mxu0 0.0
    %927 = vmatpush1.msra.mxu0 0.0
    %928 = vmatprep.subr.mxu0 0.0
    %929 = vmatpush1.msra.mxu0 0.0
    %930 = vmatprep.subr.mxu0 0.0
    %931 = vmatpush1.msra.mxu0 0.0
    %932 = vmatprep.subr.mxu0 0.0
    %933 = vmatpush1.msra.mxu0 0.0
    %934 = vmatprep.subr.mxu0 0.0
    %935 = vmatpush1.msra.mxu0 0.0
    %936 = vmatprep.subr.mxu0 0.0
    %937 = vmatpush1.msra.mxu0 0.0
    %938 = vmatprep.subr.mxu0 0.0
    %939 = vmatpush1.msra.mxu0 0.0
    %940 = vmatprep.subr.mxu0 0.0
    %941 = vmatpush1.msra.mxu0 0.0
    %942 = vmatprep.mubr.f32.mxu0 0.0
    %943 = vmatmul.mubr.f32.gmra.mrb[0].mxu0 %v867
    %v944 = vpop.f32.mrb[0].mxu0
    %v945 = vadd.f32 0.0, %v944
    %v946 = vpop.f32.mrb[0].mxu0
    %v947 = vadd.f32 0.0, %v946
    %948 = vmatprep.mubr.f32.mxu0 0.0
    %949 = vmatmul.mubr.f32.gmra.mrb[0].mxu0 %v870
    %v950 = vpop.f32.mrb[0].mxu0
    %v951 = vadd.f32 0.0, %v950
    %v952 = vpop.f32.mrb[0].mxu0
    %v953 = vadd.f32 0.0, %v952
    %954 = vmatprep.mubr.f32.mxu0 0.0
    %955 = vmatmul.mubr.f32.gmra.mrb[0].mxu0 %v873
    %v956 = vpop.f32.mrb[0].mxu0
    %v957 = vadd.f32 0.0, %v956
    %v958 = vpop.f32.mrb[0].mxu0
    %v959 = vadd.f32 0.0, %v958
    %960 = vmatprep.mubr.f32.mxu0 0.0
    %961 = vmatmul.mubr.f32.gmra.mrb[0].mxu0 %v876
    %v962 = vpop.f32.mrb[0].mxu0
    %v963 = vadd.f32 0.0, %v962
    %v964 = vpop.f32.mrb[0].mxu0
    %v965 = vadd.f32 0.0, %v964
    %966 = vdwg.mxu0
    %v967 = vmul.f32 %v210, %v945
    %v968 = vmul.f32 %v211, %v947
    %v969 = vmul.f32 %v212, %v951
    %v970 = vmul.f32 %v213, %v953
    %v971 = vmul.f32 %v214, %v957
    %v972 = vmul.f32 %v215, %v959
    %v973 = vmul.f32 %v216, %v963
    %v974 = vmul.f32 %v217, %v965
    %975 = vst [vmem:[#allocation9] sm:$0xff] %v967
    %976 = vst [vmem:[#allocation9 + $0x8] sm:$0xff] %v968
    %977 = vst [vmem:[#allocation9 + $0x10] sm:$0xff] %v969
    %978 = vst [vmem:[#allocation9 + $0x18] sm:$0xff] %v970
    %979 = vst [vmem:[#allocation9 + $0x20] sm:$0xff] %v971
    %980 = vst [vmem:[#allocation9 + $0x28] sm:$0xff] %v972
    %981 = vst [vmem:[#allocation9 + $0x30] sm:$0xff] %v973
    %982 = vst [vmem:[#allocation9 + $0x38] sm:$0xff] %v974
    // Predicated region
    $region54: #{tpu_custom_call.1} parent=1 // pred_check
      _
    $region55: #{tpu_custom_call.1} parent=1 // pred_check_branch
      %984 = sbr.rel (0) target = $region57
    $region56: #{tpu_custom_call.1} parent=1 // pred_region
      %s986 = ssub.s32 1024, 1024
      %987 = vsyncadd [#allocation4], %s986
      %s988 = sshll.u32 [#allocation9], 4
      %s989 = int_to_ptr.vmem [resolvable:$true] %s988
      %994 = dma.vmem_to_hbm [thread:$0]  %s989, 1024, %s10, [#allocation4], 256, 256, 16
    $region57: #{tpu_custom_call.1} parent=1 // pred_fallthru
      _
    // Predicated region
    $region58: #{tpu_custom_call.1} parent=1 // pred_check
      _
    $region59: #{tpu_custom_call.1} parent=1 // pred_check_branch
      %996 = sbr.rel (0) target = $region61
    $region60: #{tpu_custom_call.1} parent=1 // pred_region
      %997 = dma.done [#allocation4], 1024
    $region61: #{tpu_custom_call.1} parent=1 // pred_fallthru
      _
    %998 = vsyncpa [#allocation3], 1
    %999 = vsyncpa [#allocation7], 1
    %1000 = vsyncpa [#allocation4], 1
    %1001 = vsyncpa [#allocation5], 1

</llo_original>
